<compile_context>
chip_gen: v7x
topology: tpu7x:2x2x1
jax: 0.10.0
libtpu: 0.0.40
codegen_flags: <defaults>
</compile_context>

<pallas_src>
import functools

import jax
import jax.numpy as jnp
from jax.experimental import pallas as pl
from jax.experimental.pallas import tpu as pltpu


def _round_up(x, m):
    return ((x + m - 1) // m) * m


# -----------------------------------------------------------------------------
# Primary kernel: direct in-VMEM row gather.
# -----------------------------------------------------------------------------
def _gather_kernel(ids_ref, table_ref, out_ref):
    # ids_ref:   (1, T)  int32 token ids for this tile (lane-dense)
    # table_ref: (V, D)  float32 embedding table (resident, constant block)
    # out_ref:   (T, D)  float32 gathered embeddings
    ids = ids_ref[0, :]                                            # (T,) int32
    gathered = jnp.take(table_ref[...], ids, axis=0, mode="clip")  # (T, D)
    out_ref[...] = gathered.astype(out_ref.dtype)


@functools.partial(jax.jit, static_argnames=("block_tokens",))
def _forward_gather(x, table, *, block_tokens=256):
    b, s = x.shape
    v, d = table.shape
    n = b * s

    # Token tile size: large for real inputs, clipped (multiple of 8) for tiny
    # inputs so block dims stay legal (divisible by (8,128) or full-extent).
    tt = min(block_tokens, _round_up(n, 8))
    n_pad = _round_up(n, tt)

    ids = jnp.pad(x.reshape(n).astype(jnp.int32), (0, n_pad - n))
    ids_row = ids.reshape(1, n_pad)                    # lane-dense id layout

    grid = (n_pad // tt,)

    # Resident table (x2 for pipeline buffers) + id/output tiles + headroom.
    vmem_bytes = 2 * (v * d * 4) + 2 * (tt * d * 4) + 2 * (tt * 4) + (8 << 20)

    out = pl.pallas_call(
        _gather_kernel,
        out_shape=jax.ShapeDtypeStruct((n_pad, d), jnp.float32),
        grid_spec=pltpu.PrefetchScalarGridSpec(
            num_scalar_prefetch=0,
            grid=grid,
            in_specs=[
                pl.BlockSpec((1, tt), lambda i: (0, i)),   # ids tile (lane-dense)
                pl.BlockSpec((v, d), lambda i: (0, 0)),    # full table, constant
            ],
            out_specs=pl.BlockSpec((tt, d), lambda i: (i, 0)),
        ),
        compiler_params=pltpu.CompilerParams(
            dimension_semantics=("parallel",),
            vmem_limit_bytes=int(vmem_bytes),
        ),
    )(ids_row, table)

    return out[:n].reshape(b, s, d)


# -----------------------------------------------------------------------------
# Fallback kernel (safety net only): one-hot @ table on the MXU.
# Kept so the script still runs cleanly if the in-kernel gather lowering is
# unsupported on some jaxlib version.
# -----------------------------------------------------------------------------
def _onehot_kernel(ids_ref, table_ref, out_ref):
    ids = ids_ref[...]                                   # (T, 1) int32
    t = ids.shape[0]
    v = table_ref.shape[0]
    vocab_iota = jax.lax.broadcasted_iota(jnp.int32, (t, v), 1)
    one_hot = (vocab_iota == ids).astype(jnp.float32)    # (T, V)
    out_ref[...] = jnp.dot(one_hot, table_ref[...],
                           preferred_element_type=jnp.float32)


@functools.partial(jax.jit, static_argnames=("block_tokens",))
def _forward_onehot(x, table, *, block_tokens=256):
    b, s = x.shape
    v, d = table.shape
    n = b * s
    tt = min(block_tokens, _round_up(n, 8))
    n_pad = _round_up(n, tt)

    ids = jnp.pad(x.reshape(n).astype(jnp.int32), (0, n_pad - n))
    ids_col = ids.reshape(n_pad, 1)

    out = pl.pallas_call(
        _onehot_kernel,
        out_shape=jax.ShapeDtypeStruct((n_pad, d), jnp.float32),
        grid_spec=pltpu.PrefetchScalarGridSpec(
            num_scalar_prefetch=0,
            grid=(n_pad // tt,),
            in_specs=[
                pl.BlockSpec((tt, 1), lambda i: (i, 0)),
                pl.BlockSpec((v, d), lambda i: (0, 0)),
            ],
            out_specs=pl.BlockSpec((tt, d), lambda i: (i, 0)),
        ),
        compiler_params=pltpu.CompilerParams(
            dimension_semantics=("parallel",)),
    )(ids_col, table)

    return out[:n].reshape(b, s, d)


def text_encoder_forward(x, table, *, block_tokens=256):
    """Embedding lookup: x (B, S) int -> (B, S, D) float32 (== nn.Embedding)."""
    try:
        out = _forward_gather(x, table, block_tokens=block_tokens)
        return jax.block_until_ready(out)
    except Exception:
        # Safety net: gather lowering unavailable -> validated one-hot path.
        out = _forward_onehot(x, table, block_tokens=block_tokens)
        return jax.block_until_ready(out)


if __name__ == "__main__":
    # Small shapes consistent with the module's forward.
    vocab_size = 32
    embedding_dim = 64
    batch, seq = 2, 8

    key = jax.random.PRNGKey(0)
    k_tab, k_ids = jax.random.split(key)

    # Deterministic "parameters": emulate nn.Embedding default init N(0, 1).
    table = jax.random.normal(k_tab, (vocab_size, embedding_dim),
                              dtype=jnp.float32)
    x = jax.random.randint(k_ids, (batch, seq), 0, vocab_size, dtype=jnp.int32)

    out = text_encoder_forward(x, table)
    out = jax.block_until_ready(out)

    # Reference: plain JAX gather (== torch embedding lookup).
    ref = jnp.take(table, x, axis=0)
    assert out.shape == (batch, seq, embedding_dim), out.shape
    assert jnp.allclose(out, ref), "mismatch vs reference gather"

    print("KERNEL_OK")
</pallas_src>

<mosaic_0001>
module attributes {stable_mosaic.version = 11 : i64} {
  func.func @_onehot_kernel(%arg0: i32, %arg1: memref<16x1xi32, #tpu.memory_space<vmem>>, %arg2: memref<32x64xf32, #tpu.memory_space<vmem>>, %arg3: memref<16x64xf32, #tpu.memory_space<vmem>>) attributes {dimension_semantics = [#tpu.dimension_semantics<parallel>], iteration_bounds = array<i64: 1>, scalar_prefetch = 0 : i64, scratch_operands = 0 : i64, tpu.core_type = #tpu.core_type<tc>, window_params = [{transform_indices = @transform_0, window_bounds = array<i64: 16, 1>}, {pipeline_mode = #tpu.pipeline_mode<synchronous>, transform_indices = @transform_1, window_bounds = array<i64: 32, 64>}, {transform_indices = @transform_2, window_bounds = array<i64: 16, 64>}]} {
    %c0 = arith.constant 0 : index
    %c0_0 = arith.constant 0 : index
    %0 = vector.load %arg1[%c0, %c0_0] : memref<16x1xi32, #tpu.memory_space<vmem>>, vector<16x1xi32>
    %1 = tpu.iota {dimensions = array<i32: 1>} : vector<16x32xi32>
    %2 = vector.broadcast %0 : vector<16x1xi32> to vector<16x32xi32>
    %3 = arith.cmpi eq, %1, %2 : vector<16x32xi32>
    %4 = arith.extui %3 : vector<16x32xi1> to vector<16x32xi32>
    %5 = arith.sitofp %4 : vector<16x32xi32> to vector<16x32xf32>
    %c0_1 = arith.constant 0 : index
    %c0_2 = arith.constant 0 : index
    %6 = vector.load %arg2[%c0_1, %c0_2] : memref<32x64xf32, #tpu.memory_space<vmem>>, vector<32x64xf32>
    %cst = arith.constant dense<0.000000e+00> : vector<16x64xf32>
    %7 = tpu.matmul %5, %6, %cst {dimension_numbers = #tpu.dot_dimension_numbers<[1], [0], [0], [1], [0, 0, 1, 1], [], []>} : vector<16x32xf32>, vector<32x64xf32>, vector<16x64xf32> -> vector<16x64xf32>
    %c0_3 = arith.constant 0 : index
    %c0_4 = arith.constant 0 : index
    %8 = vector.load %arg3[%c0_3, %c0_4] : memref<16x64xf32, #tpu.memory_space<vmem>>, vector<16x64xf32>
    tpu.vector_store %arg3[%c0_3, %c0_4], %7 {strides = array<i32>} : memref<16x64xf32, #tpu.memory_space<vmem>>, vector<16x64xf32>,
    return
  }
  func.func @transform_0(%arg0: i32) -> (i32, i32) {
    %c0_i32 = arith.constant 0 : i32
    %c0_i32_0 = arith.constant 0 : i32
    return %arg0, %c0_i32 : i32, i32
  }
  func.func @transform_1(%arg0: i32) -> (i32, i32) {
    %c0_i32 = arith.constant 0 : i32
    %c0_i32_0 = arith.constant 0 : i32
    %c0_i32_1 = arith.constant 0 : i32
    return %c0_i32, %c0_i32_0 : i32, i32
  }
  func.func @transform_2(%arg0: i32) -> (i32, i32) {
    %c0_i32 = arith.constant 0 : i32
    %c0_i32_0 = arith.constant 0 : i32
    return %arg0, %c0_i32 : i32, i32
  }
}

</mosaic_0001>

<llo_original>
// kernel: _forward_onehot.1
$region0: #{_forward_onehot.1}
  #allocation0 [shape = 'u32[]', space=smem, size = 0x4, offset = 0x4, fixed_abs, tag = 'smem constant byte address 0x4 - core index']
  #allocation1 [shape = 'u32[144,128]{1,0:T(1,128)}', space=vmem, size = 0x12000, scoped, tag = 'internal scratch']
  %s0 = inlined_call_operand.vmem [shape: s32[16,1], index: 0, kind: input, shape index: {}]
  %s1 = inlined_call_operand.hbm [shape: f32[32,64], index: 1, kind: input, shape index: {}]
  %s2 = inlined_call_operand.hbm [shape: f32[16,64], index: 2, kind: output, shape index: {}]
  %s3 = sld [smem:[#allocation0]]
  $region22: #{_forward_onehot.1} parent=0
    _
  %s5 = ssub.s32 1, %s3
  %s6 = scalar_select 0, %s5, %s3
  $region1: #{_forward_onehot.1} parent=0
    #allocation2 [shape = 'u8[16384]{0}', space=vmem, size = 0x4000, scoped, tag = 'input window, operand 1, single buffered']
    #allocation3 [shape = 's32[1]{0}', space=sflag, size = 0x4, scoped, tag = 'scoped memory for _forward_onehot.1']
    #allocation4 [shape = 's32[1]{0}', space=sflag, size = 0x4, scoped, tag = 'scoped memory for _forward_onehot.1']
    #allocation5 [shape = 'u8[8192]{0}', space=vmem, size = 0x2000, scoped, tag = 'output window, operand 0, single buffered']
    %7 = vsyncpa [#allocation3], 0
    %8 = vsyncpa [#allocation4], 0
    // Predicated region
    $region2: #{_forward_onehot.1} parent=1 // pred_check
      _
    $region3: #{_forward_onehot.1} parent=1 // pred_check_branch
      %10 = sbr.rel (0) target = $region5
    $region4: #{_forward_onehot.1} parent=1 // pred_region
      _
    $region5: #{_forward_onehot.1} parent=1 // pred_fallthru
      _
    // Predicated region
    $region6: #{_forward_onehot.1} parent=1 // pred_check
      _
    $region7: #{_forward_onehot.1} parent=1 // pred_check_branch
      %12 = sbr.rel (0) target = $region9
    $region8: #{_forward_onehot.1} parent=1 // pred_region
      %s14 = ssub.s32 512, 512
      %15 = vsyncadd [#allocation3], %s14
      %s16 = sshll.u32 [#allocation2], 4
      %s17 = int_to_ptr.vmem [resolvable:$true] %s16
      %22 = dma.hbm_to_vmem [thread:$0]  %s1, 512, %s17, [#allocation3], 128, 128, 8
    $region9: #{_forward_onehot.1} parent=1 // pred_fallthru
      _
    // Predicated region
    $region10: #{_forward_onehot.1} parent=1 // pred_check
      _
    $region11: #{_forward_onehot.1} parent=1 // pred_check_branch
      %24 = sbr.rel (0) target = $region13
    $region12: #{_forward_onehot.1} parent=1 // pred_region
      %25 = dma.done [#allocation3], 512
    $region13: #{_forward_onehot.1} parent=1 // pred_fallthru
      _
    %v26 = vld [vmem:[%s0] sm:$0xff]
    %v27 = vld [vmem:[%s0 + $0x8] sm:$0xff]
    %v28 = vlaneseq
    %v29 = vand.u32 %v28, 127
    %30 = vset.pattern.permute.xlu0 0
    %31 = vperm.xlu0 %30, %v26
    %v32 = vpop.permute.xlu0 %31
    %33 = vset.pattern.permute.xlu0 0
    %34 = vperm.xlu0 %33, %v27
    %v35 = vpop.permute.xlu0 %34
    %vm36 = vcmp.eq.s32.totalorder %v29, %v32
    %vm37 = vcmp.eq.s32.totalorder %v29, %v35
    %v38 = vsel %vm36, 1, 0
    %v39 = vsel %vm37, 1, 0
    %v40 = vcvt.s32.f32 %v38
    %v41 = vcvt.s32.f32 %v39
    %v42 = vld [vmem:[#allocation2] sm:$0xff]
    %v43 = vld [vmem:[#allocation2 + $0x8] sm:$0xff]
    %v44 = vld [vmem:[#allocation2 + $0x10] sm:$0xff]
    %v45 = vld [vmem:[#allocation2 + $0x18] sm:$0xff]
    %vm46 = vcmask 261120
    %v48 = vsel %vm46, %v40, 0
    %v51 = vsel %vm46, %v41, 0
    %53 = vmatprep.subr.mxu0 0.0
    %54 = vmatpush1.msra.mxu0 %v42
    %55 = vmatprep.subr.mxu0 0.0
    %56 = vmatpush1.msra.mxu0 %v43
    %57 = vmatprep.subr.mxu0 0.0
    %58 = vmatpush1.msra.mxu0 %v44
    %59 = vmatprep.subr.mxu0 0.0
    %60 = vmatpush1.msra.mxu0 %v45
    %61 = vmatprep.subr.mxu0 0.0
    %62 = vmatpush1.msra.mxu0 0.0
    %63 = vmatprep.subr.mxu0 0.0
    %64 = vmatpush1.msra.mxu0 0.0
    %65 = vmatprep.subr.mxu0 0.0
    %66 = vmatpush1.msra.mxu0 0.0
    %67 = vmatprep.subr.mxu0 0.0
    %68 = vmatpush1.msra.mxu0 0.0
    %69 = vmatprep.subr.mxu0 0.0
    %70 = vmatpush1.msra.mxu0 0.0
    %71 = vmatprep.subr.mxu0 0.0
    %72 = vmatpush1.msra.mxu0 0.0
    %73 = vmatprep.subr.mxu0 0.0
    %74 = vmatpush1.msra.mxu0 0.0
    %75 = vmatprep.subr.mxu0 0.0
    %76 = vmatpush1.msra.mxu0 0.0
    %77 = vmatprep.subr.mxu0 0.0
    %78 = vmatpush1.msra.mxu0 0.0
    %79 = vmatprep.subr.mxu0 0.0
    %80 = vmatpush1.msra.mxu0 0.0
    %81 = vmatprep.subr.mxu0 0.0
    %82 = vmatpush1.msra.mxu0 0.0
    %83 = vmatprep.subr.mxu0 0.0
    %84 = vmatpush1.msra.mxu0 0.0
    %85 = vmatprep.subr.mxu0 0.0
    %86 = vmatpush1.msra.mxu0 0.0
    %87 = vmatprep.subr.mxu0 0.0
    %88 = vmatpush1.msra.mxu0 0.0
    %89 = vmatprep.subr.mxu0 0.0
    %90 = vmatpush1.msra.mxu0 0.0
    %91 = vmatprep.subr.mxu0 0.0
    %92 = vmatpush1.msra.mxu0 0.0
    %93 = vmatprep.subr.mxu0 0.0
    %94 = vmatpush1.msra.mxu0 0.0
    %95 = vmatprep.subr.mxu0 0.0
    %96 = vmatpush1.msra.mxu0 0.0
    %97 = vmatprep.subr.mxu0 0.0
    %98 = vmatpush1.msra.mxu0 0.0
    %99 = vmatprep.subr.mxu0 0.0
    %100 = vmatpush1.msra.mxu0 0.0
    %101 = vmatprep.subr.mxu0 0.0
    %102 = vmatpush1.msra.mxu0 0.0
    %103 = vmatprep.subr.mxu0 0.0
    %104 = vmatpush1.msra.mxu0 0.0
    %105 = vmatprep.subr.mxu0 0.0
    %106 = vmatpush1.msra.mxu0 0.0
    %107 = vmatprep.subr.mxu0 0.0
    %108 = vmatpush1.msra.mxu0 0.0
    %109 = vmatprep.subr.mxu0 0.0
    %110 = vmatpush1.msra.mxu0 0.0
    %111 = vmatprep.subr.mxu0 0.0
    %112 = vmatpush1.msra.mxu0 0.0
    %113 = vmatprep.subr.mxu0 0.0
    %114 = vmatpush1.msra.mxu0 0.0
    %115 = vmatprep.subr.mxu0 0.0
    %116 = vmatpush1.msra.mxu0 0.0
    %117 = vmatprep.mubr.f32.mxu0 0.0
    %118 = vmatmul.mubr.f32.gmra.mrb[0].mxu0 %v48
    %v119 = vpop.f32.mrb[0].mxu0
    %v120 = vadd.f32 0.0, %v119
    %v121 = vpop.f32.mrb[0].mxu0
    %122 = vmatprep.mubr.f32.mxu0 0.0
    %123 = vmatmul.mubr.f32.gmra.mrb[0].mxu0 %v51
    %v124 = vpop.f32.mrb[0].mxu0
    %v125 = vadd.f32 0.0, %v124
    %v126 = vpop.f32.mrb[0].mxu0
    %127 = vdwg.mxu0
    %vm128 = vcmask 523264
    %129 = vst.msk [vmem:[#allocation5] sm:$0xff] %vm128, %v120
    %130 = vst.msk [vmem:[#allocation5 + $0x8] sm:$0xff] %vm128, %v125
    // Predicated region
    $region14: #{_forward_onehot.1} parent=1 // pred_check
      _
    $region15: #{_forward_onehot.1} parent=1 // pred_check_branch
      %132 = sbr.rel (0) target = $region17
    $region16: #{_forward_onehot.1} parent=1 // pred_region
      %s134 = ssub.s32 256, 256
      %135 = vsyncadd [#allocation4], %s134
      %s136 = sshll.u32 [#allocation5], 4
      %s137 = int_to_ptr.vmem [resolvable:$true] %s136
      %142 = dma.vmem_to_hbm [thread:$0]  %s137, 256, %s2, [#allocation4], 128, 128, 8
    $region17: #{_forward_onehot.1} parent=1 // pred_fallthru
      _
    // Predicated region
    $region18: #{_forward_onehot.1} parent=1 // pred_check
      _
    $region19: #{_forward_onehot.1} parent=1 // pred_check_branch
      %144 = sbr.rel (0) target = $region21
    $region20: #{_forward_onehot.1} parent=1 // pred_region
      %145 = dma.done [#allocation4], 256
    $region21: #{_forward_onehot.1} parent=1 // pred_fallthru
      _
    %146 = vsyncpa [#allocation3], 1
    %147 = vsyncpa [#allocation4], 1

</llo_original>
